<compile_context>
chip_gen: v7x
topology: tpu7x:2x2x1
jax: 0.10.0
libtpu: 0.0.40
codegen_flags: <defaults>
</compile_context>

<pallas_src>
import jax
import jax.numpy as jnp
from jax.experimental import pallas as pl
from jax.experimental.pallas import tpu as pltpu


def _round_up(n, m):
    return ((n + m - 1) // m) * m


def _mlp_kernel(xT_ref, w1t_ref, b1t_ref, w2t_ref, b2t_ref, w3_ref, b3_ref, o_ref):
    xT = xT_ref[...]                                   # [2, TM]  batch on lanes
    w1t = w1t_ref[...]                                 # [H, 2]

    # Layer 1 (in_features = 2): VPU broadcast FMA instead of a K=2 MXU matmul.
    h1 = (w1t[:, 0:1] * xT[0:1, :]
          + w1t[:, 1:2] * xT[1:2, :]
          + b1t_ref[...])                              # [H, TM]
    h1 = jnp.maximum(h1, 0.0)                          # ReLU

    # Layer 2 (H x H): MXU matmul, N = TM lanes fully used.
    h2 = jnp.dot(w2t_ref[...], h1,
                 preferred_element_type=jnp.float32) + b2t_ref[...]
    h2 = jnp.maximum(h2, 0.0)                          # ReLU, [H, TM]

    # Layer 3 (out_features = 1): VPU multiply + cross-sublane reduction (XLU)
    # instead of an N=1 MXU matmul. b3 is a scalar living in SMEM.
    y = jnp.sum(h2 * w3_ref[...], axis=0, keepdims=True) + b3_ref[0, 0]   # [1, TM]
    o_ref[...] = y.astype(o_ref.dtype)


def simple_feed_forward(x, params, *, block_batch=2048):
    """x: [B, 2] float32 -> [B, 1] float32."""
    w1, b1, w2, b2, w3, b3 = params
    B = x.shape[0]
    H = w1.shape[1]

    # Batch goes on the lane axis. Clamp the tile to the (128-rounded) batch so
    # small batches do one grid step with minimal padding.
    tm = min(block_batch, _round_up(max(B, 1), 128))
    b_pad = _round_up(B, tm)

    xT = x.T                                           # [2, B]  (tiny wrapper transpose)
    if b_pad != B:
        xT = jnp.pad(xT, ((0, 0), (0, b_pad - B)))     # padded cols sliced off below

    # Weight-stationary transposed layout; done once in the wrapper (layout
    # plumbing, not per-step work).
    w1t = w1.T                                         # [H, 2]
    b1t = b1.reshape(H, 1)                             # [H, 1]
    w2t = w2.T                                         # [H, H]
    b2t = b2.reshape(H, 1)                             # [H, 1]
    b3s = b3.reshape(1, 1)                             # [1, 1] scalar -> SMEM

    grid = (b_pad // tm,)
    resident = lambda i: (0, 0)                        # weights stay in VMEM

    outT = pl.pallas_call(
        _mlp_kernel,
        out_shape=jax.ShapeDtypeStruct((1, b_pad), jnp.float32),
        grid=grid,
        in_specs=[
            pl.BlockSpec((2, tm), lambda i: (0, i)),   # x tile, pipelined
            pl.BlockSpec((H, 2), resident),            # w1^T
            pl.BlockSpec((H, 1), resident),            # b1
            pl.BlockSpec((H, H), resident),            # w2^T
            pl.BlockSpec((H, 1), resident),            # b2
            pl.BlockSpec((H, 1), resident),            # w3
            pl.BlockSpec(memory_space=pltpu.MemorySpace.SMEM),  # b3 scalar
        ],
        out_specs=pl.BlockSpec((1, tm), lambda i: (0, i)),      # lane-dense output
        compiler_params=pltpu.CompilerParams(
            dimension_semantics=("parallel",)),        # shard batch tiles across TCs (v7x)
    )(xT, w1t, b1t, w2t, b2t, w3, b3s)

    return outT[0, :B].reshape(B, 1)


def init_params(key, hidden_size):
    """Deterministic init mimicking PyTorch Linear (uniform(-1/sqrt(fan_in), +))."""
    ks = jax.random.split(key, 6)

    def linear(kw, kb, fan_in, fan_out):
        bound = 1.0 / jnp.sqrt(jnp.float32(fan_in))
        w = jax.random.uniform(kw, (fan_in, fan_out), jnp.float32, -bound, bound)
        b = jax.random.uniform(kb, (1, fan_out), jnp.float32, -bound, bound)
        return w, b

    w1, b1 = linear(ks[0], ks[1], 2, hidden_size)
    w2, b2 = linear(ks[2], ks[3], hidden_size, hidden_size)
    w3, b3 = linear(ks[4], ks[5], hidden_size, 1)
    return (w1, b1, w2, b2, w3, b3)


def _reference(x, params):
    # Layers 1 and 3 are written elementwise so the reference is exact f32
    # (like PyTorch's f32 Linear) for the degenerate K=2 / N=1 contractions,
    # matching the kernel's exact VPU math; the HxH middle layer uses the same
    # default-precision dot path as the kernel's MXU matmul.
    w1, b1, w2, b2, w3, b3 = params
    h1 = jnp.maximum(x[:, 0:1] * w1[0] + x[:, 1:2] * w1[1] + b1, 0.0)
    h2 = jnp.maximum(jnp.dot(h1, w2, preferred_element_type=jnp.float32) + b2, 0.0)
    return jnp.sum(h2 * w3[:, 0], axis=-1, keepdims=True) + b3


if __name__ == "__main__":
    key = jax.random.PRNGKey(0)
    k_x, k_p = jax.random.split(key)

    batch, hidden = 8, 32
    x = jax.random.normal(k_x, (batch, 2), jnp.float32)
    params = init_params(k_p, hidden)

    out = simple_feed_forward(x, params)
    out = jax.block_until_ready(out)
    ref = _reference(x, params)
    assert out.shape == (batch, 1)
    assert jnp.allclose(out, ref, atol=1e-4, rtol=1e-4)

    # Larger batch exercises the padding path (single big tile).
    x2 = jax.random.normal(jax.random.PRNGKey(1), (1000, 2), jnp.float32)
    out2 = jax.block_until_ready(simple_feed_forward(x2, params))
    ref2 = _reference(x2, params)
    assert out2.shape == (1000, 1)
    assert jnp.allclose(out2, ref2, atol=1e-4, rtol=1e-4)

    # Multi-step grid path (several batch tiles across the grid).
    x3 = jax.random.normal(jax.random.PRNGKey(2), (5000, 2), jnp.float32)
    out3 = jax.block_until_ready(simple_feed_forward(x3, params, block_batch=1024))
    ref3 = _reference(x3, params)
    assert out3.shape == (5000, 1)
    assert jnp.allclose(out3, ref3, atol=1e-4, rtol=1e-4)

    print("KERNEL_OK")
</pallas_src>

<mosaic_0001>
module attributes {stable_mosaic.version = 11 : i64} {
  func.func @_mlp_kernel(%arg0: i32, %arg1: memref<2x128xf32, #tpu.memory_space<vmem>>, %arg2: memref<32x2xf32, #tpu.memory_space<vmem>>, %arg3: memref<32x1xf32, #tpu.memory_space<vmem>>, %arg4: memref<32x32xf32, #tpu.memory_space<vmem>>, %arg5: memref<32x1xf32, #tpu.memory_space<vmem>>, %arg6: memref<32x1xf32, #tpu.memory_space<vmem>>, %arg7: memref<1x1xf32, #tpu.memory_space<smem>>, %arg8: memref<1x128xf32, #tpu.memory_space<vmem>>) attributes {dimension_semantics = [#tpu.dimension_semantics<parallel>], iteration_bounds = array<i64: 1>, scalar_prefetch = 0 : i64, scratch_operands = 0 : i64, tpu.core_type = #tpu.core_type<tc>, window_params = [{transform_indices = @transform_0, window_bounds = array<i64: 2, 128>}, {pipeline_mode = #tpu.pipeline_mode<synchronous>, transform_indices = @transform_1, window_bounds = array<i64: 32, 2>}, {pipeline_mode = #tpu.pipeline_mode<synchronous>, transform_indices = @transform_2, window_bounds = array<i64: 32, 1>}, {pipeline_mode = #tpu.pipeline_mode<synchronous>, transform_indices = @transform_3, window_bounds = array<i64: 32, 32>}, {pipeline_mode = #tpu.pipeline_mode<synchronous>, transform_indices = @transform_4, window_bounds = array<i64: 32, 1>}, {pipeline_mode = #tpu.pipeline_mode<synchronous>, transform_indices = @transform_5, window_bounds = array<i64: 32, 1>}, {transform_indices = @transform_6, window_bounds = array<i64: 1, 1>}, {transform_indices = @transform_7, window_bounds = array<i64: 1, 128>}]} {
    %c0 = arith.constant 0 : index
    %c0_0 = arith.constant 0 : index
    %0 = vector.load %arg1[%c0, %c0_0] : memref<2x128xf32, #tpu.memory_space<vmem>>, vector<2x128xf32>
    %c0_1 = arith.constant 0 : index
    %c0_2 = arith.constant 0 : index
    %1 = vector.load %arg2[%c0_1, %c0_2] : memref<32x2xf32, #tpu.memory_space<vmem>>, vector<32x2xf32>
    %2 = vector.extract_strided_slice %1 {offsets = [0, 0], sizes = [32, 1], strides = [1, 1]} : vector<32x2xf32> to vector<32x1xf32>
    %3 = vector.extract_strided_slice %0 {offsets = [0, 0], sizes = [1, 128], strides = [1, 1]} : vector<2x128xf32> to vector<1x128xf32>
    %4 = vector.broadcast %2 : vector<32x1xf32> to vector<32x128xf32>
    %5 = vector.broadcast %3 : vector<1x128xf32> to vector<32x128xf32>
    %6 = arith.mulf %4, %5 : vector<32x128xf32>
    %7 = vector.extract_strided_slice %1 {offsets = [0, 1], sizes = [32, 1], strides = [1, 1]} : vector<32x2xf32> to vector<32x1xf32>
    %8 = vector.extract_strided_slice %0 {offsets = [1, 0], sizes = [1, 128], strides = [1, 1]} : vector<2x128xf32> to vector<1x128xf32>
    %9 = vector.broadcast %7 : vector<32x1xf32> to vector<32x128xf32>
    %10 = vector.broadcast %8 : vector<1x128xf32> to vector<32x128xf32>
    %11 = arith.mulf %9, %10 : vector<32x128xf32>
    %12 = arith.addf %6, %11 : vector<32x128xf32>
    %c0_3 = arith.constant 0 : index
    %c0_4 = arith.constant 0 : index
    %13 = vector.load %arg3[%c0_3, %c0_4] : memref<32x1xf32, #tpu.memory_space<vmem>>, vector<32x1xf32>
    %14 = vector.broadcast %13 : vector<32x1xf32> to vector<32x128xf32>
    %15 = arith.addf %12, %14 : vector<32x128xf32>
    %cst = arith.constant 0.000000e+00 : f32
    %16 = vector.broadcast %cst : f32 to vector<32x128xf32>
    %17 = arith.maximumf %15, %16 : vector<32x128xf32>
    %c0_5 = arith.constant 0 : index
    %c0_6 = arith.constant 0 : index
    %18 = vector.load %arg4[%c0_5, %c0_6] : memref<32x32xf32, #tpu.memory_space<vmem>>, vector<32x32xf32>
    %cst_7 = arith.constant dense<0.000000e+00> : vector<32x128xf32>
    %19 = tpu.matmul %18, %17, %cst_7 {dimension_numbers = #tpu.dot_dimension_numbers<[1], [0], [0], [1], [0, 0, 1, 1], [], []>} : vector<32x32xf32>, vector<32x128xf32>, vector<32x128xf32> -> vector<32x128xf32>
    %c0_8 = arith.constant 0 : index
    %c0_9 = arith.constant 0 : index
    %20 = vector.load %arg5[%c0_8, %c0_9] : memref<32x1xf32, #tpu.memory_space<vmem>>, vector<32x1xf32>
    %21 = vector.broadcast %20 : vector<32x1xf32> to vector<32x128xf32>
    %22 = arith.addf %19, %21 : vector<32x128xf32>
    %cst_10 = arith.constant 0.000000e+00 : f32
    %23 = vector.broadcast %cst_10 : f32 to vector<32x128xf32>
    %24 = arith.maximumf %22, %23 : vector<32x128xf32>
    %c0_11 = arith.constant 0 : index
    %c0_12 = arith.constant 0 : index
    %25 = vector.load %arg6[%c0_11, %c0_12] : memref<32x1xf32, #tpu.memory_space<vmem>>, vector<32x1xf32>
    %26 = vector.broadcast %25 : vector<32x1xf32> to vector<32x128xf32>
    %27 = arith.mulf %24, %26 : vector<32x128xf32>
    %cst_13 = arith.constant dense<0.000000e+00> : vector<128xf32>
    %28 = vector.multi_reduction <add>, %27, %cst_13 [0] : vector<32x128xf32> to vector<128xf32>
    %29 = vector.shape_cast %28 : vector<128xf32> to vector<1x128xf32>
    %c0_14 = arith.constant 0 : index
    %c0_15 = arith.constant 0 : index
    %30 = memref.load %arg7[%c0_14, %c0_15] : memref<1x1xf32, #tpu.memory_space<smem>>
    %31 = vector.broadcast %30 : f32 to vector<1x128xf32>
    %32 = arith.addf %29, %31 : vector<1x128xf32>
    %c0_16 = arith.constant 0 : index
    %c0_17 = arith.constant 0 : index
    %33 = vector.load %arg8[%c0_16, %c0_17] : memref<1x128xf32, #tpu.memory_space<vmem>>, vector<1x128xf32>
    tpu.vector_store %arg8[%c0_16, %c0_17], %32 {strides = array<i32>} : memref<1x128xf32, #tpu.memory_space<vmem>>, vector<1x128xf32>,
    return
  }
  func.func @transform_0(%arg0: i32) -> (i32, i32) {
    %c0_i32 = arith.constant 0 : i32
    %c0_i32_0 = arith.constant 0 : i32
    return %c0_i32, %arg0 : i32, i32
  }
  func.func @transform_1(%arg0: i32) -> (i32, i32) {
    %c0_i32 = arith.constant 0 : i32
    %c0_i32_0 = arith.constant 0 : i32
    %c0_i32_1 = arith.constant 0 : i32
    return %c0_i32, %c0_i32_0 : i32, i32
  }
  func.func @transform_2(%arg0: i32) -> (i32, i32) {
    %c0_i32 = arith.constant 0 : i32
    %c0_i32_0 = arith.constant 0 : i32
    %c0_i32_1 = arith.constant 0 : i32
    return %c0_i32, %c0_i32_0 : i32, i32
  }
  func.func @transform_3(%arg0: i32) -> (i32, i32) {
    %c0_i32 = arith.constant 0 : i32
    %c0_i32_0 = arith.constant 0 : i32
    %c0_i32_1 = arith.constant 0 : i32
    return %c0_i32, %c0_i32_0 : i32, i32
  }
  func.func @transform_4(%arg0: i32) -> (i32, i32) {
    %c0_i32 = arith.constant 0 : i32
    %c0_i32_0 = arith.constant 0 : i32
    %c0_i32_1 = arith.constant 0 : i32
    return %c0_i32, %c0_i32_0 : i32, i32
  }
  func.func @transform_5(%arg0: i32) -> (i32, i32) {
    %c0_i32 = arith.constant 0 : i32
    %c0_i32_0 = arith.constant 0 : i32
    %c0_i32_1 = arith.constant 0 : i32
    return %c0_i32, %c0_i32_0 : i32, i32
  }
  func.func @transform_6(%arg0: i32) -> (i32, i32) {
    %c0_i32 = arith.constant 0 : i32
    %c0_i32_0 = arith.constant 0 : i32
    %c0_i32_1 = arith.constant 0 : i32
    return %c0_i32, %c0_i32_0 : i32, i32
  }
  func.func @transform_7(%arg0: i32) -> (i32, i32) {
    %c0_i32 = arith.constant 0 : i32
    %c0_i32_0 = arith.constant 0 : i32
    return %c0_i32, %arg0 : i32, i32
  }
}

</mosaic_0001>

<llo_original>
// kernel: tpu_custom_call.1
$region0: #{tpu_custom_call.1}
  #allocation0 [shape = 'u32[]', space=smem, size = 0x4, offset = 0x4, fixed_abs, tag = 'smem constant byte address 0x4 - core index']
  #allocation1 [shape = 'u32[144,128]{1,0:T(1,128)}', space=vmem, size = 0x12000, scoped, tag = 'internal scratch']
  #allocation2 [shape = 'f32[1,1]{1,0:T(1,128)S(6)}', space=smem, size = 0x200, scoped, tag = 'scoped memory for tpu_custom_call.1']
  %s0 = inlined_call_operand.vmem [shape: f32[2,128], index: 0, kind: input, shape index: {}]
  %s1 = inlined_call_operand.vmem [shape: f32[32,2], index: 1, kind: input, shape index: {}]
  %s2 = inlined_call_operand.vmem [shape: f32[32,1], index: 2, kind: input, shape index: {}]
  %s3 = inlined_call_operand.vmem [shape: f32[32,32], index: 3, kind: input, shape index: {}]
  %s4 = inlined_call_operand.vmem [shape: f32[32,1], index: 4, kind: input, shape index: {}]
  %s5 = inlined_call_operand.vmem [shape: f32[32,1], index: 5, kind: input, shape index: {}]
  %s6 = inlined_call_operand.<no memory space> [shape: f32[1,1], index: 6, kind: input, shape index: {}]
  %s7 = inlined_call_operand.hbm [shape: f32[1,128], index: 7, kind: output, shape index: {}]
  %s8 = sld [smem:[#allocation0]]
  $region38: #{tpu_custom_call.1} parent=0
    _
  %s10 = ssub.s32 1, %s8
  %s11 = scalar_select 0, %s10, %s8
  %12 = sst [smem:[#allocation2]] %s6
  $region1: #{tpu_custom_call.1} parent=0
    #allocation3 [shape = 'u8[512]{0}', space=vmem, size = 0x400, scoped, tag = 'output window, operand 0, single buffered']
    #allocation4 [shape = 's32[1]{0}', space=sflag, size = 0x4, scoped, tag = 'scoped memory for tpu_custom_call.1']
    %13 = vsyncpa [#allocation4], 0
    // Predicated region
    $region2: #{tpu_custom_call.1} parent=1 // pred_check
      _
    $region3: #{tpu_custom_call.1} parent=1 // pred_check_branch
      %15 = sbr.rel (0) target = $region5
    $region4: #{tpu_custom_call.1} parent=1 // pred_region
      _
    $region5: #{tpu_custom_call.1} parent=1 // pred_fallthru
      _
    // Predicated region
    $region6: #{tpu_custom_call.1} parent=1 // pred_check
      _
    $region7: #{tpu_custom_call.1} parent=1 // pred_check_branch
      %17 = sbr.rel (0) target = $region9
    $region8: #{tpu_custom_call.1} parent=1 // pred_region
      _
    $region9: #{tpu_custom_call.1} parent=1 // pred_fallthru
      _
    // Predicated region
    $region10: #{tpu_custom_call.1} parent=1 // pred_check
      _
    $region11: #{tpu_custom_call.1} parent=1 // pred_check_branch
      %19 = sbr.rel (0) target = $region13
    $region12: #{tpu_custom_call.1} parent=1 // pred_region
      _
    $region13: #{tpu_custom_call.1} parent=1 // pred_fallthru
      _
    // Predicated region
    $region14: #{tpu_custom_call.1} parent=1 // pred_check
      _
    $region15: #{tpu_custom_call.1} parent=1 // pred_check_branch
      %21 = sbr.rel (0) target = $region17
    $region16: #{tpu_custom_call.1} parent=1 // pred_region
      _
    $region17: #{tpu_custom_call.1} parent=1 // pred_fallthru
      _
    // Predicated region
    $region18: #{tpu_custom_call.1} parent=1 // pred_check
      _
    $region19: #{tpu_custom_call.1} parent=1 // pred_check_branch
      %23 = sbr.rel (0) target = $region21
    $region20: #{tpu_custom_call.1} parent=1 // pred_region
      _
    $region21: #{tpu_custom_call.1} parent=1 // pred_fallthru
      _
    // Predicated region
    $region22: #{tpu_custom_call.1} parent=1 // pred_check
      _
    $region23: #{tpu_custom_call.1} parent=1 // pred_check_branch
      %25 = sbr.rel (0) target = $region25
    $region24: #{tpu_custom_call.1} parent=1 // pred_region
      _
    $region25: #{tpu_custom_call.1} parent=1 // pred_fallthru
      _
    // Predicated region
    $region26: #{tpu_custom_call.1} parent=1 // pred_check
      _
    $region27: #{tpu_custom_call.1} parent=1 // pred_check_branch
      %27 = sbr.rel (0) target = $region29
    $region28: #{tpu_custom_call.1} parent=1 // pred_region
      _
    $region29: #{tpu_custom_call.1} parent=1 // pred_fallthru
      _
    %v28 = vld [vmem:[%s0] sm:$0x3]
    %v29 = vld [vmem:[%s1] sm:$0xff]
    %v30 = vld [vmem:[%s1 + $0x8] sm:$0xff]
    %v31 = vld [vmem:[%s1 + $0x10] sm:$0xff]
    %v32 = vld [vmem:[%s1 + $0x18] sm:$0xff]
    %34 = vset.pattern.permute.xlu0 0
    %35 = vperm.xlu0 %34, %v29
    %v36 = vpop.permute.xlu0 %35
    %39 = vset.pattern.permute.xlu0 0
    %40 = vperm.xlu0 %39, %v30
    %v41 = vpop.permute.xlu0 %40
    %44 = vset.pattern.permute.xlu0 0
    %45 = vperm.xlu0 %44, %v31
    %v46 = vpop.permute.xlu0 %45
    %49 = vset.pattern.permute.xlu0 0
    %50 = vperm.xlu0 %49, %v32
    %v51 = vpop.permute.xlu0 %50
    %v53 = vlaneseq
    %v54 = vshrl.u32 %v53, 7
    %v55 = vsub.s32 0, %v54
    %v56 = vrot.slane %v28, %v55
    %v57 = vmul.f32 %v36, %v56
    %v58 = vmul.f32 %v41, %v56
    %v59 = vmul.f32 %v46, %v56
    %v60 = vmul.f32 %v51, %v56
    %61 = vset.pattern.permute.xlu0 1
    %62 = vperm.xlu0 %61, %v29
    %v63 = vpop.permute.xlu0 %62
    %65 = vset.pattern.permute.xlu0 1
    %66 = vperm.xlu0 %65, %v30
    %v67 = vpop.permute.xlu0 %66
    %69 = vset.pattern.permute.xlu0 1
    %70 = vperm.xlu0 %69, %v31
    %v71 = vpop.permute.xlu0 %70
    %73 = vset.pattern.permute.xlu0 1
    %74 = vperm.xlu0 %73, %v32
    %v75 = vpop.permute.xlu0 %74
    %v77 = vlaneseq
    %v78 = vshrl.u32 %v77, 7
    %v79 = vsub.s32 1, %v78
    %v80 = vrot.slane %v28, %v79
    %v81 = vmul.f32 %v63, %v80
    %v82 = vmul.f32 %v67, %v80
    %v83 = vmul.f32 %v71, %v80
    %v84 = vmul.f32 %v75, %v80
    %v85 = vadd.f32 %v57, %v81
    %v86 = vadd.f32 %v58, %v82
    %v87 = vadd.f32 %v59, %v83
    %v88 = vadd.f32 %v60, %v84
    %v89 = vld [vmem:[%s2] sm:$0xff]
    %v90 = vld [vmem:[%s2 + $0x8] sm:$0xff]
    %v91 = vld [vmem:[%s2 + $0x10] sm:$0xff]
    %v92 = vld [vmem:[%s2 + $0x18] sm:$0xff]
    %94 = vset.pattern.permute.xlu0 0
    %95 = vperm.xlu0 %94, %v89
    %v96 = vpop.permute.xlu0 %95
    %99 = vset.pattern.permute.xlu0 0
    %100 = vperm.xlu0 %99, %v90
    %v101 = vpop.permute.xlu0 %100
    %104 = vset.pattern.permute.xlu0 0
    %105 = vperm.xlu0 %104, %v91
    %v106 = vpop.permute.xlu0 %105
    %109 = vset.pattern.permute.xlu0 0
    %110 = vperm.xlu0 %109, %v92
    %v111 = vpop.permute.xlu0 %110
    %v113 = vadd.f32 %v85, %v96
    %v114 = vadd.f32 %v86, %v101
    %v115 = vadd.f32 %v87, %v106
    %v116 = vadd.f32 %v88, %v111
    %v117 = vmax.f32 %v113, 0.0
    %v118 = vmax.f32 %v114, 0.0
    %v119 = vmax.f32 %v115, 0.0
    %v120 = vmax.f32 %v116, 0.0
    %v121 = vld [vmem:[%s3] sm:$0xff]
    %v122 = vld [vmem:[%s3 + $0x8] sm:$0xff]
    %v123 = vld [vmem:[%s3 + $0x10] sm:$0xff]
    %v124 = vld [vmem:[%s3 + $0x18] sm:$0xff]
    %v125 = vld [vmem:[%s4] sm:$0xff]
    %v126 = vld [vmem:[%s4 + $0x8] sm:$0xff]
    %v127 = vld [vmem:[%s4 + $0x10] sm:$0xff]
    %v128 = vld [vmem:[%s4 + $0x18] sm:$0xff]
    %130 = vset.pattern.permute.xlu0 0
    %131 = vperm.xlu0 %130, %v125
    %v132 = vpop.permute.xlu0 %131
    %135 = vset.pattern.permute.xlu0 0
    %136 = vperm.xlu0 %135, %v126
    %v137 = vpop.permute.xlu0 %136
    %140 = vset.pattern.permute.xlu0 0
    %141 = vperm.xlu0 %140, %v127
    %v142 = vpop.permute.xlu0 %141
    %145 = vset.pattern.permute.xlu0 0
    %146 = vperm.xlu0 %145, %v128
    %v147 = vpop.permute.xlu0 %146
    %vm149 = vcmask 261120
    %v151 = vsel %vm149, %v121, 0
    %v154 = vsel %vm149, %v122, 0
    %v157 = vsel %vm149, %v123, 0
    %v160 = vsel %vm149, %v124, 0
    %162 = vmatprep.subr.mxu0 0.0
    %163 = vmatpush1.msra.mxu0 %v117
    %164 = vmatprep.subr.mxu0 0.0
    %165 = vmatpush1.msra.mxu0 %v118
    %166 = vmatprep.subr.mxu0 0.0
    %167 = vmatpush1.msra.mxu0 %v119
    %168 = vmatprep.subr.mxu0 0.0
    %169 = vmatpush1.msra.mxu0 %v120
    %170 = vmatprep.subr.mxu0 0.0
    %171 = vmatpush1.msra.mxu0 0.0
    %172 = vmatprep.subr.mxu0 0.0
    %173 = vmatpush1.msra.mxu0 0.0
    %174 = vmatprep.subr.mxu0 0.0
    %175 = vmatpush1.msra.mxu0 0.0
    %176 = vmatprep.subr.mxu0 0.0
    %177 = vmatpush1.msra.mxu0 0.0
    %178 = vmatprep.subr.mxu0 0.0
    %179 = vmatpush1.msra.mxu0 0.0
    %180 = vmatprep.subr.mxu0 0.0
    %181 = vmatpush1.msra.mxu0 0.0
    %182 = vmatprep.subr.mxu0 0.0
    %183 = vmatpush1.msra.mxu0 0.0
    %184 = vmatprep.subr.mxu0 0.0
    %185 = vmatpush1.msra.mxu0 0.0
    %186 = vmatprep.subr.mxu0 0.0
    %187 = vmatpush1.msra.mxu0 0.0
    %188 = vmatprep.subr.mxu0 0.0
    %189 = vmatpush1.msra.mxu0 0.0
    %190 = vmatprep.subr.mxu0 0.0
    %191 = vmatpush1.msra.mxu0 0.0
    %192 = vmatprep.subr.mxu0 0.0
    %193 = vmatpush1.msra.mxu0 0.0
    %194 = vmatprep.subr.mxu0 0.0
    %195 = vmatpush1.msra.mxu0 0.0
    %196 = vmatprep.subr.mxu0 0.0
    %197 = vmatpush1.msra.mxu0 0.0
    %198 = vmatprep.subr.mxu0 0.0
    %199 = vmatpush1.msra.mxu0 0.0
    %200 = vmatprep.subr.mxu0 0.0
    %201 = vmatpush1.msra.mxu0 0.0
    %202 = vmatprep.subr.mxu0 0.0
    %203 = vmatpush1.msra.mxu0 0.0
    %204 = vmatprep.subr.mxu0 0.0
    %205 = vmatpush1.msra.mxu0 0.0
    %206 = vmatprep.subr.mxu0 0.0
    %207 = vmatpush1.msra.mxu0 0.0
    %208 = vmatprep.subr.mxu0 0.0
    %209 = vmatpush1.msra.mxu0 0.0
    %210 = vmatprep.subr.mxu0 0.0
    %211 = vmatpush1.msra.mxu0 0.0
    %212 = vmatprep.subr.mxu0 0.0
    %213 = vmatpush1.msra.mxu0 0.0
    %214 = vmatprep.subr.mxu0 0.0
    %215 = vmatpush1.msra.mxu0 0.0
    %216 = vmatprep.subr.mxu0 0.0
    %217 = vmatpush1.msra.mxu0 0.0
    %218 = vmatprep.subr.mxu0 0.0
    %219 = vmatpush1.msra.mxu0 0.0
    %220 = vmatprep.subr.mxu0 0.0
    %221 = vmatpush1.msra.mxu0 0.0
    %222 = vmatprep.subr.mxu0 0.0
    %223 = vmatpush1.msra.mxu0 0.0
    %224 = vmatprep.subr.mxu0 0.0
    %225 = vmatpush1.msra.mxu0 0.0
    %226 = vmatprep.mubr.f32.mxu0 0.0
    %227 = vmatmul.mubr.f32.gmra.mrb[0].mxu0 %v151
    %v228 = vpop.f32.mrb[0].mxu0
    %v229 = vadd.f32 %v132, %v228
    %v230 = vpop.f32.mrb[0].mxu0
    %231 = vmatprep.mubr.f32.mxu0 0.0
    %232 = vmatmul.mubr.f32.gmra.mrb[0].mxu0 %v154
    %v233 = vpop.f32.mrb[0].mxu0
    %v234 = vadd.f32 %v137, %v233
    %v235 = vpop.f32.mrb[0].mxu0
    %236 = vmatprep.mubr.f32.mxu0 0.0
    %237 = vmatmul.mubr.f32.gmra.mrb[0].mxu0 %v157
    %v238 = vpop.f32.mrb[0].mxu0
    %v239 = vadd.f32 %v142, %v238
    %v240 = vpop.f32.mrb[0].mxu0
    %241 = vmatprep.mubr.f32.mxu0 0.0
    %242 = vmatmul.mubr.f32.gmra.mrb[0].mxu0 %v160
    %v243 = vpop.f32.mrb[0].mxu0
    %v244 = vadd.f32 %v147, %v243
    %v245 = vpop.f32.mrb[0].mxu0
    %246 = vdwg.mxu0
    %v247 = vmax.f32 %v229, 0.0
    %v248 = vmax.f32 %v234, 0.0
    %v249 = vmax.f32 %v239, 0.0
    %v250 = vmax.f32 %v244, 0.0
    %v251 = vld [vmem:[%s5] sm:$0xff]
    %v252 = vld [vmem:[%s5 + $0x8] sm:$0xff]
    %v253 = vld [vmem:[%s5 + $0x10] sm:$0xff]
    %v254 = vld [vmem:[%s5 + $0x18] sm:$0xff]
    %256 = vset.pattern.permute.xlu0 0
    %257 = vperm.xlu0 %256, %v251
    %v258 = vpop.permute.xlu0 %257
    %261 = vset.pattern.permute.xlu0 0
    %262 = vperm.xlu0 %261, %v252
    %v263 = vpop.permute.xlu0 %262
    %266 = vset.pattern.permute.xlu0 0
    %267 = vperm.xlu0 %266, %v253
    %v268 = vpop.permute.xlu0 %267
    %271 = vset.pattern.permute.xlu0 0
    %272 = vperm.xlu0 %271, %v254
    %v273 = vpop.permute.xlu0 %272
    %v275 = vmul.f32 %v247, %v258
    %v276 = vmul.f32 %v248, %v263
    %v277 = vmul.f32 %v249, %v268
    %v278 = vmul.f32 %v250, %v273
    %v279 = vadd.f32 %v275, %v276
    %v280 = vadd.f32 %v279, %v277
    %v281 = vadd.f32 %v280, %v278
    %v282 = vrot.slane %v281, 4
    %v283 = vadd.f32 %v281, %v282
    %v284 = vrot.slane %v283, 2
    %v285 = vadd.f32 %v283, %v284
    %v286 = vrot.slane %v285, 1
    %v287 = vadd.f32 %v285, %v286
    %s288 = sld [smem:[#allocation2]]
    %v289 = vstv %s288
    %v290 = vadd.f32 %v287, %v289
    %291 = vst [vmem:[#allocation3] sm:$0x1] %v290
    // Predicated region
    $region30: #{tpu_custom_call.1} parent=1 // pred_check
      _
    $region31: #{tpu_custom_call.1} parent=1 // pred_check_branch
      %293 = sbr.rel (0) target = $region33
    $region32: #{tpu_custom_call.1} parent=1 // pred_region
      %s295 = ssub.s32 16, 16
      %296 = vsyncadd [#allocation4], %s295
      %s298 = sshll.u32 [#allocation3], 4
      %s299 = int_to_ptr.vmem [resolvable:$true] %s298
      %301 = dma.vmem_to_hbm [thread:$0]  %s299, 16, %s7, [#allocation4]
    $region33: #{tpu_custom_call.1} parent=1 // pred_fallthru
      _
    // Predicated region
    $region34: #{tpu_custom_call.1} parent=1 // pred_check
      _
    $region35: #{tpu_custom_call.1} parent=1 // pred_check_branch
      %303 = sbr.rel (0) target = $region37
    $region36: #{tpu_custom_call.1} parent=1 // pred_region
      %304 = dma.done [#allocation4], 16
    $region37: #{tpu_custom_call.1} parent=1 // pred_fallthru
      _
    %305 = vsyncpa [#allocation4], 1

</llo_original>
